<compile_context>
chip_gen: v5e
topology: v5e:2x2
jax: 0.10.0
libtpu: 0.0.40
codegen_flags: <defaults>
</compile_context>

<pallas_src>
import functools

import jax
import jax.numpy as jnp
from jax import lax
from jax.experimental import pallas as pl
from jax.experimental.pallas import tpu as pltpu


# --------------------------------------------------------------------------- #
# pltpu.roll direction convention probe (resolved once, before the main kernels
# are traced).  +1 means pltpu.roll matches jnp.roll (out[p] = in[(p - shift) % n]).
# --------------------------------------------------------------------------- #
_ROLL_CONVENTION = None


def _roll_sign():
    global _ROLL_CONVENTION
    if _ROLL_CONVENTION is None:
        def k(x_ref, o_ref):
            o_ref[...] = pltpu.roll(x_ref[...], shift=1, axis=1)

        x = jnp.tile(jnp.arange(128, dtype=jnp.float32)[None, :], (8, 1))
        y = pl.pallas_call(
            k, out_shape=jax.ShapeDtypeStruct((8, 128), jnp.float32))(x)
        _ROLL_CONVENTION = 1 if int(round(float(y[0, 0]))) == 127 else -1
    return _ROLL_CONVENTION


# --------------------------------------------------------------------------- #
# Lane-shift helper: out[:, p] = v[:, p + delta] (wrapped or zero-filled at the
# ends -- boundary columns/rows are masked out by the caller either way).
# --------------------------------------------------------------------------- #
def _lane_shift(v, delta):
    c, n = v.shape
    if delta == 0:
        return v
    if n % 128 == 0:
        shift = (-_roll_sign() * delta) % n
        return pltpu.roll(v, shift=shift, axis=1)
    # small-frame fallback (HW < 128, layer 4): zero-padded slice shift
    if delta > 0:
        return jnp.concatenate(
            [v[:, delta:], jnp.zeros((c, delta), v.dtype)], axis=1)
    return jnp.concatenate(
        [jnp.zeros((c, -delta), v.dtype), v[:, :delta]], axis=1)


def _make_tap_masks(H, W):
    """Per-tap validity masks (1, H*W) for a lane-folded frame; center tap is None."""
    HW = H * W
    flat = lax.broadcasted_iota(jnp.int32, (1, HW), 1)
    xpos = flat % W
    ypos = flat // W
    masks = []
    for ky in range(3):
        for kx in range(3):
            dy, dx = ky - 1, kx - 1
            m = None
            if dx == 1:
                m = xpos < W - 1
            elif dx == -1:
                m = xpos >= 1
            if dy == 1:
                m = (ypos < H - 1) if m is None else (m & (ypos < H - 1))
            elif dy == -1:
                m = (ypos >= 1) if m is None else (m & (ypos >= 1))
            masks.append(m)
    return masks


def _conv_taps(v_bf16, masks, W):
    """9 shifted+masked copies of a (C, H*W) bf16 frame (im2col rows, tap-major)."""
    taps = []
    k = 0
    for ky in range(3):
        for kx in range(3):
            delta = (ky - 1) * W + (kx - 1)
            t = _lane_shift(v_bf16, delta)
            if masks[k] is not None:
                t = jnp.where(masks[k], t, jnp.zeros((), v_bf16.dtype))
            taps.append(t)
            k += 1
    return taps


# --------------------------------------------------------------------------- #
# Fused ConvLSTM layer kernel: full T recurrence for one batch element.
#   x_ref:     (T, Cin, H*W)  bf16
#   w_ref:     (4*Chid, 9*(Cin+Chid)) bf16  (tap-major / channel-minor, x then h)
#   b_ref:     (4*Chid, 1) f32
#   scale/shift: (Chid, 1) f32   (eval-mode BN folded)
#   out_ref:   (T, Chid, H*W) bf16
#   h_ref/c_ref: VMEM scratch (Chid, H*W) f32
# --------------------------------------------------------------------------- #
def _convlstm_layer_kernel(x_ref, w_ref, b_ref, scale_ref, shift_ref, out_ref,
                           h_ref, c_ref, *, H, W, T, Chid):
    # fresh state per batch element (one grid step == one batch element)
    h_ref[...] = jnp.zeros_like(h_ref)
    c_ref[...] = jnp.zeros_like(c_ref)

    masks = _make_tap_masks(H, W)      # hoisted: computed once, reused for all taps/steps
    w = w_ref[...]                     # hoisted weight / bias / BN loads
    bias = b_ref[...]
    scale = scale_ref[...]
    shift = shift_ref[...]

    # Time recurrence fully unrolled inside one grid step (T is static), i.e. the
    # fully-unrolled form of lax.fori_loop(0, T, ..., unroll=True): no per-step grid
    # overhead, full LLO scheduling visibility across steps.
    for t in range(T):
        x_t = x_ref[t, :, :]                               # (Cin, HW) bf16
        h_prev = h_ref[...].astype(jnp.bfloat16)           # (Chid, HW)

        # cat(x, h) im2col -> ONE MXU matmul per step (K = 9*(Cin+Chid))
        patches = jnp.concatenate(
            _conv_taps(x_t, masks, W) + _conv_taps(h_prev, masks, W), axis=0)
        acc = jnp.dot(w, patches, preferred_element_type=jnp.float32) + bias
        acc = jnp.maximum(acc, 0.0)        # relu(conv(cat(x, h))) as in the torch cell

        i = jax.nn.sigmoid(acc[0 * Chid:1 * Chid, :])
        f = jax.nn.sigmoid(acc[1 * Chid:2 * Chid, :])
        o = jax.nn.sigmoid(acc[2 * Chid:3 * Chid, :])
        g = jnp.tanh(acc[3 * Chid:4 * Chid, :])

        c_new = f * c_ref[...] + i * g
        h_new = o * jnp.tanh(c_new)
        c_ref[...] = c_new
        h_ref[...] = h_new

        # fused eval-mode BatchNorm + ReLU epilogue, bf16 store
        out_ref[t, :, :] = jnp.maximum(
            h_new * scale + shift, 0.0).astype(out_ref.dtype)


def convlstm_layer(x, layer, H, W):
    """x: (B, T, Cin, H*W) bf16 -> pooled (B, T, Chid, (H//2)*(W//2)) bf16."""
    B, T, Cin, HW = x.shape
    w2d = layer["w2d"]                                 # (4*Chid, 9*(Cin+Chid)) bf16
    C4, K = w2d.shape
    Chid = C4 // 4
    bias = layer["b"].reshape(C4, 1)
    scale = layer["bn_scale"].reshape(Chid, 1)
    shift = layer["bn_shift"].reshape(Chid, 1)

    hbn = pl.pallas_call(
        functools.partial(_convlstm_layer_kernel, H=H, W=W, T=T, Chid=Chid),
        out_shape=jax.ShapeDtypeStruct((B, T, Chid, HW), jnp.bfloat16),
        grid_spec=pltpu.PrefetchScalarGridSpec(
            num_scalar_prefetch=0,
            grid=(B,),
            in_specs=[
                pl.BlockSpec((None, T, Cin, HW), lambda b: (b, 0, 0, 0)),
                pl.BlockSpec((C4, K), lambda b: (0, 0)),
                pl.BlockSpec((C4, 1), lambda b: (0, 0)),
                pl.BlockSpec((Chid, 1), lambda b: (0, 0)),
                pl.BlockSpec((Chid, 1), lambda b: (0, 0)),
            ],
            out_specs=pl.BlockSpec((None, T, Chid, HW), lambda b: (b, 0, 0, 0)),
            scratch_shapes=[
                pltpu.VMEM((Chid, HW), jnp.float32),   # hidden state (lane-dense)
                pltpu.VMEM((Chid, HW), jnp.float32),   # cell state
            ],
        ),
        compiler_params=pltpu.CompilerParams(
            dimension_semantics=("parallel",),
            vmem_limit_bytes=32 * 1024 * 1024),
    )(x, w2d, bias, scale, shift)

    # 2x2 spatial max-pool between layers (small bf16 XLA op).
    # TODO(synk): could be fused into the kernel epilogue (XLU roll-max + strided
    #             compaction); kept outside since it is a tiny, bandwidth-cheap op.
    y = hbn.reshape(B, T, Chid, H // 2, 2, W // 2, 2).max(axis=(4, 6))
    return y.reshape(B, T, Chid, (H // 2) * (W // 2))


# --------------------------------------------------------------------------- #
# MLP head: relu(x @ W1 + b1) @ W2 + b2  (dropout = identity in eval mode)
# --------------------------------------------------------------------------- #
def _head_kernel(x_ref, w1_ref, b1_ref, w2_ref, b2_ref, out_ref):
    h = jnp.dot(x_ref[...], w1_ref[...], preferred_element_type=jnp.float32)
    h = jnp.maximum(h + b1_ref[...], 0.0)
    out_ref[...] = (jnp.dot(h, w2_ref[...], preferred_element_type=jnp.float32)
                    + b2_ref[...])


def mlp_head(x2d, w1, b1, w2, b2):
    N, D = x2d.shape
    Dh, Do = w1.shape[1], w2.shape[1]
    return pl.pallas_call(
        _head_kernel,
        out_shape=jax.ShapeDtypeStruct((N, Do), jnp.float32),
        grid=(1,),
        in_specs=[
            pl.BlockSpec((N, D), lambda i: (0, 0)),
            pl.BlockSpec((D, Dh), lambda i: (0, 0)),
            pl.BlockSpec((1, Dh), lambda i: (0, 0)),
            pl.BlockSpec((Dh, Do), lambda i: (0, 0)),
            pl.BlockSpec((1, Do), lambda i: (0, 0)),
        ],
        out_specs=pl.BlockSpec((N, Do), lambda i: (0, 0)),
    )(x2d, w1, b1.reshape(1, -1), w2, b2.reshape(1, -1))


# --------------------------------------------------------------------------- #
# Parameters (deterministic synthetic init matching the module's shapes)
# --------------------------------------------------------------------------- #
def init_params(key, input_dim, eps=1e-5):
    dims = [(input_dim, 8), (8, 16), (16, 32), (32, 64)]
    layers = []
    for cin, chid in dims:
        key, kw, kb, kg, kbe, km, kv = jax.random.split(key, 7)
        s = 1.0 / float(((cin + chid) * 9) ** 0.5)
        w4 = jax.random.uniform(kw, (4 * chid, cin + chid, 3, 3), jnp.float32, -s, s)
        b = jax.random.uniform(kb, (4 * chid,), jnp.float32, -s, s)
        wx4 = w4[:, :cin]                              # (4C, Cin, 3, 3)
        wh4 = w4[:, cin:]                              # (4C, Chid, 3, 3)
        # pack OIHW -> (4C, 9*C), tap-major / channel-minor, then cat [x | h] on K
        wx2d = jnp.transpose(wx4, (0, 2, 3, 1)).reshape(4 * chid, 9 * cin)
        wh2d = jnp.transpose(wh4, (0, 2, 3, 1)).reshape(4 * chid, 9 * chid)
        w2d = jnp.concatenate([wx2d, wh2d], axis=1).astype(jnp.bfloat16)
        gamma = jax.random.uniform(kg, (chid,), jnp.float32, 0.5, 1.5)
        beta = jax.random.uniform(kbe, (chid,), jnp.float32, -0.1, 0.1)
        mean = jax.random.uniform(km, (chid,), jnp.float32, -0.1, 0.1)
        var = jax.random.uniform(kv, (chid,), jnp.float32, 0.8, 1.2)
        scale = gamma / jnp.sqrt(var + eps)
        shift = beta - mean * scale
        layers.append(dict(wx4=wx4, wh4=wh4, w2d=w2d, b=b,
                           bn_scale=scale, bn_shift=shift))
    key, k1, k2, k3, k4 = jax.random.split(key, 5)
    s1, s2 = 1.0 / (1024.0 ** 0.5), 1.0 / (128.0 ** 0.5)
    return dict(
        layers=layers,
        fc1_w=jax.random.uniform(k1, (1024, 128), jnp.float32, -s1, s1),
        fc1_b=jax.random.uniform(k2, (128,), jnp.float32, -s1, s1),
        fc2_w=jax.random.uniform(k3, (128, 2), jnp.float32, -s2, s2),
        fc2_b=jax.random.uniform(k4, (2,), jnp.float32, -s2, s2),
    )


# --------------------------------------------------------------------------- #
# Full forward pass (Pallas)
# --------------------------------------------------------------------------- #
def baseline_3et_forward(x_btchw, params):
    x = x_btchw.astype(jnp.float32)                    # (B, T, C, H, W) torch layout
    B, T, C, H, W = x.shape
    # channels-first lane-folded frames, bf16 (matmul operand precision)
    x = x.reshape(B, T, C, H * W).astype(jnp.bfloat16)
    h, w = H, W
    for layer in params["layers"]:
        x = convlstm_layer(x, layer, h, w)
        h //= 2
        w //= 2
    flat = x.reshape(B * T, -1).astype(jnp.float32)    # (C, H, W) flatten order == torch
    out = mlp_head(flat, params["fc1_w"], params["fc1_b"],
                   params["fc2_w"], params["fc2_b"])
    return out.reshape(B, T, 2)


# --------------------------------------------------------------------------- #
# Pure-JAX reference (same bf16 operand quantization, f32 accumulation)
# --------------------------------------------------------------------------- #
def reference_forward(x_btchw, params):
    x = x_btchw.astype(jnp.float32)                    # (B, T, C, H, W)
    B, T = x.shape[:2]
    dn = ("NCHW", "OIHW", "NCHW")
    for layer in params["layers"]:
        wx = layer["wx4"].astype(jnp.bfloat16)
        wh = layer["wh4"].astype(jnp.bfloat16)
        bias = layer["b"]
        chid = wh.shape[0] // 4
        _, _, _, H, W = x.shape
        h = jnp.zeros((B, chid, H, W), jnp.float32)
        c = jnp.zeros((B, chid, H, W), jnp.float32)
        outs = []
        for t in range(T):
            conv = (lax.conv_general_dilated(
                        x[:, t].astype(jnp.bfloat16), wx, (1, 1), "SAME",
                        dimension_numbers=dn, preferred_element_type=jnp.float32)
                    + lax.conv_general_dilated(
                        h.astype(jnp.bfloat16), wh, (1, 1), "SAME",
                        dimension_numbers=dn, preferred_element_type=jnp.float32)
                    + bias[None, :, None, None])
            conv = jnp.maximum(conv, 0.0)
            i, f, o, g = jnp.split(conv, 4, axis=1)
            i, f, o = jax.nn.sigmoid(i), jax.nn.sigmoid(f), jax.nn.sigmoid(o)
            g = jnp.tanh(g)
            c = f * c + i * g
            h = o * jnp.tanh(c)
            outs.append(h)
        y = jnp.stack(outs, axis=1)                    # (B, T, Chid, H, W)
        y = jnp.maximum(y * layer["bn_scale"][None, None, :, None, None]
                        + layer["bn_shift"][None, None, :, None, None], 0.0)
        x = y.reshape(B, T, chid, H // 2, 2, W // 2, 2).max(axis=(4, 6))
    flat = x.reshape(B * T, -1)
    hfc = jnp.maximum(flat @ params["fc1_w"] + params["fc1_b"], 0.0)
    out = hfc @ params["fc2_w"] + params["fc2_b"]
    return out.reshape(B, T, 2)


if __name__ == "__main__":
    # fc1 expects 1024 = 64 * (H/16) * (W/16)  =>  H = W = 64.
    B, T, C, H, W = 2, 4, 1, 64, 64
    key = jax.random.PRNGKey(0)
    kx, kp = jax.random.split(key)
    x = jax.random.normal(kx, (B, T, C, H, W), jnp.float32)
    params = init_params(kp, C)

    _roll_sign()   # resolve pltpu.roll direction convention before tracing the kernels

    fwd = jax.jit(baseline_3et_forward)
    y = jax.block_until_ready(fwd(x, params))
    assert y.shape == (B, T, 2), y.shape
    assert bool(jnp.all(jnp.isfinite(y)))

    y_ref = jax.block_until_ready(jax.jit(reference_forward)(x, params))
    err = float(jnp.max(jnp.abs(y - y_ref)))
    assert err < 5e-2, f"max abs error vs reference: {err}"
    print("KERNEL_OK")
</pallas_src>

<mosaic_0001>
module attributes {stable_mosaic.version = 11 : i64} {
  func.func @k(%arg0: memref<8x128xf32, #tpu.memory_space<vmem>>, %arg1: memref<8x128xf32, #tpu.memory_space<vmem>>) attributes {dimension_semantics = [], scalar_prefetch = 0 : i64, scratch_operands = 0 : i64, tpu.core_type = #tpu.core_type<tc>} {
    %c0 = arith.constant 0 : index
    %c0_0 = arith.constant 0 : index
    %0 = vector.load %arg0[%c0, %c0_0] : memref<8x128xf32, #tpu.memory_space<vmem>>, vector<8x128xf32>
    %c1_i32 = arith.constant 1 : i32
    %1 = tpu.dynamic_rotate %0 by %c1_i32 dim 1 : vector<8x128xf32>, i32 -> vector<8x128xf32>
    %c0_1 = arith.constant 0 : index
    %c0_2 = arith.constant 0 : index
    %2 = vector.load %arg1[%c0_1, %c0_2] : memref<8x128xf32, #tpu.memory_space<vmem>>, vector<8x128xf32>
    tpu.vector_store %arg1[%c0_1, %c0_2], %1 {strides = array<i32>} : memref<8x128xf32, #tpu.memory_space<vmem>>, vector<8x128xf32>,
    return
  }
}

</mosaic_0001>

<llo_original>
// kernel: tpu_custom_call.1
$region0: #{tpu_custom_call.1}
  #allocation0 [shape = 'u32[]', space=smem, size = 0x4, offset = 0x4, fixed_abs, tag = 'smem constant byte address 0x4 - core index']
  #allocation1 [shape = 'u32[72,128]{1,0:T(1,128)}', space=vmem, size = 0x9000, scoped, tag = 'internal scratch']
  %s0 = inlined_call_operand.hbm [shape: f32[8,128], index: 0, kind: input, shape index: {}]
  %s1 = inlined_call_operand.hbm [shape: f32[8,128], index: 1, kind: output, shape index: {}]
  %s2 = sld [smem:[#allocation0]]
  $region18: #{tpu_custom_call.1} parent=0
    _
  %s4 = ssub.s32 1, %s2
  %s5 = scalar_select 0, %s4, %s2
  $region1: #{tpu_custom_call.1} parent=0
    #allocation2 [shape = 'u8[4096]{0}', space=vmem, size = 0x1000, scoped, tag = 'input window, operand 0, single buffered']
    #allocation3 [shape = 's32[1]{0}', space=sflag, size = 0x4, scoped, tag = 'scoped memory for tpu_custom_call.1']
    #allocation4 [shape = 's32[1]{0}', space=sflag, size = 0x4, scoped, tag = 'scoped memory for tpu_custom_call.1']
    #allocation5 [shape = 'u8[4096]{0}', space=vmem, size = 0x1000, scoped, tag = 'output window, operand 0, single buffered']
    %6 = vsyncpa [#allocation3], 0
    %7 = vsyncpa [#allocation4], 0
    // Predicated region
    $region2: #{tpu_custom_call.1} parent=1 // pred_check
      _
    $region3: #{tpu_custom_call.1} parent=1 // pred_check_branch
      %9 = sbr.rel (0) target = $region5
    $region4: #{tpu_custom_call.1} parent=1 // pred_region
      %11 = vsyncadd [#allocation3], 0
      %s13 = sshll.u32 %s0, 4
      %s14 = int_to_ptr.hbm [resolvable:$true] %s13
      %s15 = sshll.u32 [#allocation2], 4
      %s16 = int_to_ptr.vmem [resolvable:$true] %s15
      %18 = dma.hbm_to_vmem [thread:$0]  %s14, 128, %s16, [#allocation3]
    $region5: #{tpu_custom_call.1} parent=1 // pred_fallthru
      _
    // Predicated region
    $region6: #{tpu_custom_call.1} parent=1 // pred_check
      _
    $region7: #{tpu_custom_call.1} parent=1 // pred_check_branch
      %20 = sbr.rel (0) target = $region9
    $region8: #{tpu_custom_call.1} parent=1 // pred_region
      %22 = dma.done [#allocation3], 128
    $region9: #{tpu_custom_call.1} parent=1 // pred_fallthru
      _
    %v23 = vld [vmem:[#allocation2] sm:$0xff]
    %24 = vrot.lane.b32.xlu0 %v23, 1
    %v25 = vpop.permute.xlu0 %24
    %26 = vst [vmem:[#allocation5] sm:$0xff] %v25
    // Predicated region
    $region10: #{tpu_custom_call.1} parent=1 // pred_check
      _
    $region11: #{tpu_custom_call.1} parent=1 // pred_check_branch
      %28 = sbr.rel (0) target = $region13
    $region12: #{tpu_custom_call.1} parent=1 // pred_region
      %30 = vsyncadd [#allocation4], 0
      %s32 = sshll.u32 [#allocation5], 4
      %s33 = int_to_ptr.vmem [resolvable:$true] %s32
      %s34 = sshll.u32 %s1, 4
      %s35 = int_to_ptr.hbm [resolvable:$true] %s34
      %37 = dma.vmem_to_hbm [thread:$0]  %s33, 128, %s35, [#allocation4]
    $region13: #{tpu_custom_call.1} parent=1 // pred_fallthru
      _
    // Predicated region
    $region14: #{tpu_custom_call.1} parent=1 // pred_check
      _
    $region15: #{tpu_custom_call.1} parent=1 // pred_check_branch
      %39 = sbr.rel (0) target = $region17
    $region16: #{tpu_custom_call.1} parent=1 // pred_region
      %41 = dma.done [#allocation4], 128
    $region17: #{tpu_custom_call.1} parent=1 // pred_fallthru
      _
    %42 = vsyncpa [#allocation3], 1
    %43 = vsyncpa [#allocation4], 1

</llo_original>
